<compile_context>
chip_gen: v5e
topology: v5e:2x2
jax: 0.10.0
libtpu: 0.0.40
codegen_flags: <defaults>
</compile_context>

<pallas_src>
import functools
import numpy as np
import jax
import jax.numpy as jnp
from jax.experimental import pallas as pl
from jax.experimental.pallas import tpu as pltpu

PAD = 0  # Constants.PAD

# ----------------------------------------------------------------------------
# Config (small, self-consistent with the module's __init__)
# ----------------------------------------------------------------------------
CONFIG = dict(
    vocab=40,            # len(symbols) + 1
    max_seq_len=16,
    d_model=32,          # encoder_hidden
    n_layers=2,          # encoder_layer
    n_head=2,            # encoder_head
    d_inner=64,          # conv_filter_size
    kernel_size=(9, 1),  # conv_kernel_size
)

# ----------------------------------------------------------------------------
# Sinusoid position table (matches get_sinusoid_encoding_table)
# ----------------------------------------------------------------------------
def get_sinusoid_encoding_table(n_position, d_hid):
    pos = np.arange(n_position)[:, None].astype(np.float64)
    hid = np.arange(d_hid)[None, :]
    angle = pos / np.power(10000.0, 2.0 * (hid // 2) / d_hid)
    table = np.array(angle)
    table[:, 0::2] = np.sin(angle[:, 0::2])
    table[:, 1::2] = np.cos(angle[:, 1::2])
    return jnp.asarray(table, dtype=jnp.float32)


# ----------------------------------------------------------------------------
# In-kernel helpers
# ----------------------------------------------------------------------------
def _layer_norm(x, g, b, eps=1e-5):
    mu = jnp.mean(x, axis=-1, keepdims=True)
    var = jnp.mean((x - mu) ** 2, axis=-1, keepdims=True)
    return (x - mu) * jax.lax.rsqrt(var + eps) * g + b


def _im2col(x2d, B, L, K):
    """x2d: (B*L, C) -> (B*L, K*C); 'same' zero padding, per batch row-block."""
    if K == 1:
        return x2d
    C = x2d.shape[1]
    p = (K - 1) // 2
    zer = jnp.zeros((p, C), jnp.float32)
    rows = []
    for b in range(B):                                   # static, tiny B
        seg = x2d[b * L:(b + 1) * L, :]                  # sublane-aligned slice
        xp = jnp.concatenate([zer, seg, zer], axis=0)    # (L + 2p, C)
        rows.append(jnp.concatenate([xp[t:t + L, :] for t in range(K)], axis=1))
    return jnp.concatenate(rows, axis=0)                 # (B*L, K*C)


# ----------------------------------------------------------------------------
# Pallas kernel: the whole FFT-block stack.  grid = (n_layers,)
#   x_ref      (BL, D)           input activations (read only at layer 0)
#   bias_ref   (BL, BL)          additive attention bias (0 / -1e9)
#   pmask_ref  (BL, 1)           1.0 where PAD token
#   qkv_ref    (1, D+1, 3D)      rows [0:D) = [wq|wk|wv], row D = [bq|bk|bv]
#   conv1_ref  (1, K1*D+1, Din)  rows [0:K1*D) = w1 (im2col layout), last = b1
#   d_ref      (1, K2*Din+D+6,D) rows: w2 | wo | bo | g1 | be1 | b2 | g2 | be2
#   out_ref    (BL, D)
#   act_ref    (BL, D)           VMEM scratch: activation carried across layers
# ----------------------------------------------------------------------------
def encoder_stack_kernel(n_head, B, L,
                         x_ref, bias_ref, pmask_ref,
                         qkv_ref, conv1_ref, d_ref,
                         out_ref, act_ref):
    BL, D = x_ref.shape
    Dinner = conv1_ref.shape[2]
    K1 = (conv1_ref.shape[1] - 1) // D
    K2 = (d_ref.shape[1] - D - 6) // Dinner
    d_k = D // n_head
    inv_temp = 1.0 / float(np.sqrt(d_k))

    @pl.when(pl.program_id(0) == 0)
    def _():
        act_ref[...] = x_ref[...]

    x = act_ref[...]                           # (BL, D), previous layer's output
    pad_keep = 1.0 - pmask_ref[...]            # (BL, 1): 0.0 at padded rows
    bias = bias_ref[...]                       # (BL, BL)

    # ---- fused Q/K/V projection (one lane-dense matmul) ---------------------
    qkv_slab = qkv_ref[0]                      # (D+1, 3D)
    qkv = (jnp.dot(x, qkv_slab[:D, :], preferred_element_type=jnp.float32)
           + qkv_slab[D:D + 1, :])             # (BL, 3D)

    # ---- unpack the D-wide parameter slab ------------------------------------
    d_slab = d_ref[0]                          # (K2*Dinner + D + 6, D)
    w2 = d_slab[:K2 * Dinner, :]
    wo = d_slab[K2 * Dinner:K2 * Dinner + D, :]
    off = K2 * Dinner + D
    bo = d_slab[off + 0:off + 1, :]
    g1 = d_slab[off + 1:off + 2, :]
    be1 = d_slab[off + 2:off + 3, :]
    b2 = d_slab[off + 3:off + 4, :]
    g2 = d_slab[off + 4:off + 5, :]
    be2 = d_slab[off + 5:off + 6, :]

    # ---- multi-head self-attention: batch folded into one (BL, BL) score -----
    # cross-batch and padded-key entries are masked by the additive bias.
    ctx_heads = []
    for h in range(n_head):                    # small static head count
        qh = qkv[:, h * d_k:(h + 1) * d_k]
        kh = qkv[:, D + h * d_k:D + (h + 1) * d_k]
        vh = qkv[:, 2 * D + h * d_k:2 * D + (h + 1) * d_k]
        s = jnp.dot(qh, kh.T, preferred_element_type=jnp.float32) * inv_temp + bias
        s = s - jnp.max(s, axis=-1, keepdims=True)
        e = jnp.exp(s)
        p = e * pl.reciprocal(jnp.sum(e, axis=-1, keepdims=True), approx=True)
        ctx_heads.append(jnp.dot(p, vh, preferred_element_type=jnp.float32))
    ctx = jnp.concatenate(ctx_heads, axis=-1)  # (BL, D)

    attn = jnp.dot(ctx, wo, preferred_element_type=jnp.float32) + bo
    attn = _layer_norm(attn + x, g1, be1) * pad_keep      # masked_fill(mask, 0)

    # ---- position-wise conv feed-forward via im2col --------------------------
    conv1_slab = conv1_ref[0]                  # (K1*D+1, Dinner)
    w1 = conv1_slab[:K1 * D, :]
    b1 = conv1_slab[K1 * D:K1 * D + 1, :]

    h1 = jnp.dot(_im2col(attn, B, L, K1), w1,
                 preferred_element_type=jnp.float32) + b1
    h1 = jnp.maximum(h1, 0.0)
    y = jnp.dot(_im2col(h1, B, L, K2), w2,
                preferred_element_type=jnp.float32) + b2

    out = _layer_norm(y + attn, g2, be2) * pad_keep        # masked_fill(mask, 0)
    act_ref[...] = out
    out_ref[...] = out


def encoder_stack(x2d, attn_bias, pad_f, qkv_slab, conv1_slab, d_slab,
                  *, n_head, B, L):
    """Run all FFT blocks in one pallas_call.  x2d: (B*L, D) f32."""
    BL, D = x2d.shape
    n_layers = qkv_slab.shape[0]
    kernel = functools.partial(encoder_stack_kernel, n_head, B, L)
    return pl.pallas_call(
        kernel,
        out_shape=jax.ShapeDtypeStruct((BL, D), jnp.float32),
        grid=(n_layers,),
        in_specs=[
            pl.BlockSpec((BL, D), lambda l: (0, 0)),
            pl.BlockSpec((BL, BL), lambda l: (0, 0)),
            pl.BlockSpec((BL, 1), lambda l: (0, 0)),
            pl.BlockSpec((1,) + qkv_slab.shape[1:], lambda l: (l, 0, 0)),
            pl.BlockSpec((1,) + conv1_slab.shape[1:], lambda l: (l, 0, 0)),
            pl.BlockSpec((1,) + d_slab.shape[1:], lambda l: (l, 0, 0)),
        ],
        out_specs=pl.BlockSpec((BL, D), lambda l: (0, 0)),
        scratch_shapes=[pltpu.VMEM((BL, D), jnp.float32)],
        compiler_params=pltpu.CompilerParams(dimension_semantics=("arbitrary",)),
    )(x2d, attn_bias, pad_f, qkv_slab, conv1_slab, d_slab)


# ----------------------------------------------------------------------------
# Parameter init (deterministic, PyTorch-like shapes) and packing into slabs
# ----------------------------------------------------------------------------
def init_layer_params(key, D, Dinner, K1, K2):
    ks = jax.random.split(key, 8)

    def dense(k, fan_in, fan_out):
        lim = 1.0 / np.sqrt(fan_in)
        return jax.random.uniform(k, (fan_in, fan_out), jnp.float32, -lim, lim)

    def bias(k, fan_in, n):
        lim = 1.0 / np.sqrt(fan_in)
        return jax.random.uniform(k, (1, n), jnp.float32, -lim, lim)

    def conv(k, K, cin, cout):
        lim = 1.0 / np.sqrt(cin * K)
        return jax.random.uniform(k, (K, cin, cout), jnp.float32, -lim, lim)

    return dict(
        wq=dense(ks[0], D, D), bq=bias(ks[0], D, D),
        wk=dense(ks[1], D, D), bk=bias(ks[1], D, D),
        wv=dense(ks[2], D, D), bv=bias(ks[2], D, D),
        wo=dense(ks[3], D, D), bo=bias(ks[3], D, D),
        g1=jnp.ones((1, D), jnp.float32), be1=jnp.zeros((1, D), jnp.float32),
        w1=conv(ks[4], K1, D, Dinner), b1=bias(ks[5], D * K1, Dinner),
        w2=conv(ks[6], K2, Dinner, D), b2=bias(ks[7], Dinner * K2, D),
        g2=jnp.ones((1, D), jnp.float32), be2=jnp.zeros((1, D), jnp.float32),
    )


def pack_layer_params(layer_params, D, Dinner, K1, K2):
    """Pack per-layer dicts into 3 stacked slabs (leading axis = layer)."""
    qkv_slabs, conv1_slabs, d_slabs = [], [], []
    for p in layer_params:
        wqkv = jnp.concatenate([p["wq"], p["wk"], p["wv"]], axis=1)   # (D, 3D)
        bqkv = jnp.concatenate([p["bq"], p["bk"], p["bv"]], axis=1)   # (1, 3D)
        qkv_slabs.append(jnp.concatenate([wqkv, bqkv], axis=0))       # (D+1, 3D)

        w1f = p["w1"].reshape(K1 * D, Dinner)                         # im2col layout
        conv1_slabs.append(jnp.concatenate([w1f, p["b1"]], axis=0))   # (K1*D+1, Din)

        w2f = p["w2"].reshape(K2 * Dinner, D)
        d_slabs.append(jnp.concatenate(
            [w2f, p["wo"], p["bo"], p["g1"], p["be1"],
             p["b2"], p["g2"], p["be2"]], axis=0))                    # (K2*Din+D+6, D)
    return (jnp.stack(qkv_slabs), jnp.stack(conv1_slabs), jnp.stack(d_slabs))


# ----------------------------------------------------------------------------
# Encoder forward (glue in plain JAX, whole FFT stack in one Pallas kernel)
# ----------------------------------------------------------------------------
def build_masks(mask, B, L):
    flat = mask.reshape(B * L)                               # True where PAD
    pad_f = flat.astype(jnp.float32)[:, None]                # (BL, 1)
    batch_ids = jnp.arange(B * L, dtype=jnp.int32) // L
    same_batch = batch_ids[:, None] == batch_ids[None, :]
    allowed = same_batch & (~flat)[None, :]                  # key-side mask
    attn_bias = jnp.where(allowed, 0.0, -1e9).astype(jnp.float32)
    return attn_bias, pad_f


def encoder_forward(src_seq, mask, emb_table, pos_table, packed, n_head):
    # TODO(synk): the src_len > max_seq_len eval branch (on-the-fly sinusoid
    # table) is not implemented; test shapes keep L <= max_seq_len.
    B, L = src_seq.shape
    enc = emb_table[src_seq] + pos_table[None, :L, :]        # embedding + positions
    x2d = enc.reshape(B * L, -1)
    attn_bias, pad_f = build_masks(mask, B, L)
    qkv_slab, conv1_slab, d_slab = packed
    out2d = encoder_stack(x2d, attn_bias, pad_f, qkv_slab, conv1_slab, d_slab,
                          n_head=n_head, B=B, L=L)
    return out2d.reshape(B, L, -1)


# ----------------------------------------------------------------------------
# Pure-JAX reference (same math) for a numeric sanity check
# ----------------------------------------------------------------------------
def fft_block_ref(x, mask_f, p, n_head):
    B, L, D = x.shape
    dk = D // n_head

    def ln(z, g, b, eps=1e-5):
        mu = z.mean(-1, keepdims=True)
        var = ((z - mu) ** 2).mean(-1, keepdims=True)
        return (z - mu) / jnp.sqrt(var + eps) * g + b

    q = x @ p["wq"] + p["bq"][0]
    k = x @ p["wk"] + p["bk"][0]
    v = x @ p["wv"] + p["bv"][0]
    sp = lambda t: t.reshape(B, L, n_head, dk).transpose(0, 2, 1, 3)
    s = jnp.einsum("bhld,bhmd->bhlm", sp(q), sp(k)) / np.sqrt(dk)
    key_pad = mask_f[:, None, None, :, 0] > 0.5
    s = jnp.where(key_pad, -1e9, s)
    a = jax.nn.softmax(s, axis=-1)
    ctx = jnp.einsum("bhlm,bhmd->bhld", a, sp(v)).transpose(0, 2, 1, 3).reshape(B, L, D)
    attn_out = ln(ctx @ p["wo"] + p["bo"][0] + x, p["g1"][0], p["be1"][0])
    attn_out = attn_out * (1.0 - mask_f)

    K1, K2 = p["w1"].shape[0], p["w2"].shape[0]
    p1, p2 = (K1 - 1) // 2, (K2 - 1) // 2
    xp = jnp.pad(attn_out, ((0, 0), (p1, p1), (0, 0)))
    h1 = sum(jnp.einsum("bli,io->blo", xp[:, t:t + L], p["w1"][t]) for t in range(K1))
    h1 = jnp.maximum(h1 + p["b1"][0], 0.0)
    hp = jnp.pad(h1, ((0, 0), (p2, p2), (0, 0)))
    y = sum(jnp.einsum("bli,io->blo", hp[:, t:t + L], p["w2"][t]) for t in range(K2))
    y = y + p["b2"][0]
    out = ln(y + attn_out, p["g2"][0], p["be2"][0])
    return out * (1.0 - mask_f)


def encoder_ref(src_seq, mask, emb_table, pos_table, layer_params, n_head):
    B, L = src_seq.shape
    enc = emb_table[src_seq] + pos_table[None, :L, :]
    mask_f = mask.astype(jnp.float32)[..., None]
    for p in layer_params:
        enc = fft_block_ref(enc, mask_f, p, n_head)
    return enc


# ----------------------------------------------------------------------------
if __name__ == "__main__":
    cfg = CONFIG
    B, L = 2, 8
    D, H = cfg["d_model"], cfg["n_head"]
    Dinner = cfg["d_inner"]
    K1, K2 = cfg["kernel_size"]
    key = jax.random.PRNGKey(0)
    k_emb, k_seq, *k_layers = jax.random.split(key, 2 + cfg["n_layers"])

    # embedding table: N(0,1), padding_idx=0 row zeroed
    emb_table = jax.random.normal(k_emb, (cfg["vocab"], D), jnp.float32)
    emb_table = emb_table.at[PAD].set(0.0)
    pos_table = get_sinusoid_encoding_table(cfg["max_seq_len"] + 1, D)

    layer_params = [init_layer_params(k, D, Dinner, K1, K2) for k in k_layers]
    packed = pack_layer_params(layer_params, D, Dinner, K1, K2)

    # input tokens, with some trailing padding in the second sequence
    src_seq = jax.random.randint(k_seq, (B, L), 1, cfg["vocab"], dtype=jnp.int32)
    src_seq = src_seq.at[1, 6:].set(PAD)
    mask = (src_seq == PAD)   # True where padded (matches get_mask_from_lengths)

    out = encoder_forward(src_seq, mask, emb_table, pos_table, packed, H)
    out = jax.block_until_ready(out)

    ref = jax.block_until_ready(
        encoder_ref(src_seq, mask, emb_table, pos_table, layer_params, H))
    np.testing.assert_allclose(np.asarray(out), np.asarray(ref), rtol=5e-2, atol=5e-2)

    assert out.shape == (B, L, D) and out.dtype == jnp.float32
    print("KERNEL_OK")
</pallas_src>

<mosaic_0001>
module attributes {stable_mosaic.version = 11 : i64} {
  func.func @encoder_stack_kernel(%arg0: i32, %arg1: memref<16x32xf32, #tpu.memory_space<vmem>>, %arg2: memref<16x16xf32, #tpu.memory_space<vmem>>, %arg3: memref<16x1xf32, #tpu.memory_space<vmem>>, %arg4: memref<1x33x96xf32, #tpu.memory_space<vmem>>, %arg5: memref<1x289x64xf32, #tpu.memory_space<vmem>>, %arg6: memref<1x102x32xf32, #tpu.memory_space<vmem>>, %arg7: memref<16x32xf32, #tpu.memory_space<vmem>>, %arg8: memref<16x32xf32, #tpu.memory_space<vmem>>) attributes {dimension_semantics = [#tpu.dimension_semantics<arbitrary>], iteration_bounds = array<i64: 2>, scalar_prefetch = 0 : i64, scratch_operands = 1 : i64, tpu.core_type = #tpu.core_type<tc>, window_params = [{pipeline_mode = #tpu.pipeline_mode<synchronous>, transform_indices = @transform_0, window_bounds = array<i64: 16, 32>}, {pipeline_mode = #tpu.pipeline_mode<synchronous>, transform_indices = @transform_1, window_bounds = array<i64: 16, 16>}, {pipeline_mode = #tpu.pipeline_mode<synchronous>, transform_indices = @transform_2, window_bounds = array<i64: 16, 1>}, {transform_indices = @transform_3, window_bounds = array<i64: 1, 33, 96>}, {transform_indices = @transform_4, window_bounds = array<i64: 1, 289, 64>}, {transform_indices = @transform_5, window_bounds = array<i64: 1, 102, 32>}, {pipeline_mode = #tpu.pipeline_mode<synchronous>, transform_indices = @transform_6, window_bounds = array<i64: 16, 32>}]} {
    %c0_i32 = arith.constant 0 : i32
    %0 = arith.cmpi eq, %arg0, %c0_i32 : i32
    %1 = arith.extui %0 : i1 to i32
    %c0_i32_0 = arith.constant 0 : i32
    %2 = arith.cmpi ne, %1, %c0_i32_0 : i32
    scf.if %2 {
      %c0_45 = arith.constant 0 : index
      %c0_46 = arith.constant 0 : index
      %157 = vector.load %arg1[%c0_45, %c0_46] : memref<16x32xf32, #tpu.memory_space<vmem>>, vector<16x32xf32>
      %c0_47 = arith.constant 0 : index
      %c0_48 = arith.constant 0 : index
      %158 = vector.load %arg8[%c0_47, %c0_48] : memref<16x32xf32, #tpu.memory_space<vmem>>, vector<16x32xf32>
      tpu.vector_store %arg8[%c0_47, %c0_48], %157 {strides = array<i32>} : memref<16x32xf32, #tpu.memory_space<vmem>>, vector<16x32xf32>,
    } else {
    }
    %c0 = arith.constant 0 : index
    %c0_1 = arith.constant 0 : index
    %3 = vector.load %arg8[%c0, %c0_1] : memref<16x32xf32, #tpu.memory_space<vmem>>, vector<16x32xf32>
    %c0_2 = arith.constant 0 : index
    %c0_3 = arith.constant 0 : index
    %4 = vector.load %arg3[%c0_2, %c0_3] : memref<16x1xf32, #tpu.memory_space<vmem>>, vector<16x1xf32>
    %cst = arith.constant 1.000000e+00 : f32
    %5 = vector.broadcast %cst : f32 to vector<16x1xf32>
    %6 = arith.subf %5, %4 : vector<16x1xf32>
    %c0_4 = arith.constant 0 : index
    %c0_5 = arith.constant 0 : index
    %7 = vector.load %arg2[%c0_4, %c0_5] : memref<16x16xf32, #tpu.memory_space<vmem>>, vector<16x16xf32>
    %c0_6 = arith.constant 0 : index
    %c0_7 = arith.constant 0 : index
    %c0_8 = arith.constant 0 : index
    %8 = vector.load %arg4[%c0_6, %c0_7, %c0_8] : memref<1x33x96xf32, #tpu.memory_space<vmem>>, vector<1x33x96xf32>
    %9 = vector.shape_cast %8 : vector<1x33x96xf32> to vector<33x96xf32>
    %10 = vector.extract_strided_slice %9 {offsets = [0, 0], sizes = [32, 96], strides = [1, 1]} : vector<33x96xf32> to vector<32x96xf32>
    %cst_9 = arith.constant dense<0.000000e+00> : vector<16x96xf32>
    %11 = tpu.matmul %3, %10, %cst_9 {dimension_numbers = #tpu.dot_dimension_numbers<[1], [0], [0], [1], [0, 0, 1, 1], [], []>} : vector<16x32xf32>, vector<32x96xf32>, vector<16x96xf32> -> vector<16x96xf32>
    %12 = vector.extract_strided_slice %9 {offsets = [32, 0], sizes = [1, 96], strides = [1, 1]} : vector<33x96xf32> to vector<1x96xf32>
    %13 = vector.broadcast %12 : vector<1x96xf32> to vector<16x96xf32>
    %14 = arith.addf %11, %13 : vector<16x96xf32>
    %c0_10 = arith.constant 0 : index
    %c0_11 = arith.constant 0 : index
    %c0_12 = arith.constant 0 : index
    %15 = vector.load %arg6[%c0_10, %c0_11, %c0_12] : memref<1x102x32xf32, #tpu.memory_space<vmem>>, vector<1x102x32xf32>
    %16 = vector.shape_cast %15 : vector<1x102x32xf32> to vector<102x32xf32>
    %17 = vector.extract_strided_slice %16 {offsets = [0, 0], sizes = [64, 32], strides = [1, 1]} : vector<102x32xf32> to vector<64x32xf32>
    %18 = vector.extract_strided_slice %16 {offsets = [64, 0], sizes = [32, 32], strides = [1, 1]} : vector<102x32xf32> to vector<32x32xf32>
    %19 = vector.extract_strided_slice %16 {offsets = [96, 0], sizes = [1, 32], strides = [1, 1]} : vector<102x32xf32> to vector<1x32xf32>
    %20 = vector.extract_strided_slice %16 {offsets = [97, 0], sizes = [1, 32], strides = [1, 1]} : vector<102x32xf32> to vector<1x32xf32>
    %21 = vector.extract_strided_slice %16 {offsets = [98, 0], sizes = [1, 32], strides = [1, 1]} : vector<102x32xf32> to vector<1x32xf32>
    %22 = vector.extract_strided_slice %16 {offsets = [99, 0], sizes = [1, 32], strides = [1, 1]} : vector<102x32xf32> to vector<1x32xf32>
    %23 = vector.extract_strided_slice %16 {offsets = [100, 0], sizes = [1, 32], strides = [1, 1]} : vector<102x32xf32> to vector<1x32xf32>
    %24 = vector.extract_strided_slice %16 {offsets = [101, 0], sizes = [1, 32], strides = [1, 1]} : vector<102x32xf32> to vector<1x32xf32>
    %25 = vector.extract_strided_slice %14 {offsets = [0, 0], sizes = [16, 16], strides = [1, 1]} : vector<16x96xf32> to vector<16x16xf32>
    %26 = vector.extract_strided_slice %14 {offsets = [0, 32], sizes = [16, 16], strides = [1, 1]} : vector<16x96xf32> to vector<16x16xf32>
    %27 = vector.extract_strided_slice %14 {offsets = [0, 64], sizes = [16, 16], strides = [1, 1]} : vector<16x96xf32> to vector<16x16xf32>
    %28 = tpu.transpose %26, [1, 0] : vector<16x16xf32> -> vector<16x16xf32>
    %cst_13 = arith.constant dense<0.000000e+00> : vector<16x16xf32>
    %29 = tpu.matmul %25, %28, %cst_13 {dimension_numbers = #tpu.dot_dimension_numbers<[1], [0], [0], [1], [0, 0, 1, 1], [], []>} : vector<16x16xf32>, vector<16x16xf32>, vector<16x16xf32> -> vector<16x16xf32>
    %cst_14 = arith.constant 2.500000e-01 : f32
    %30 = vector.broadcast %cst_14 : f32 to vector<16x16xf32>
    %31 = arith.mulf %29, %30 : vector<16x16xf32>
    %32 = arith.addf %31, %7 : vector<16x16xf32>
    %cst_15 = arith.constant dense<0xFF800000> : vector<16xf32>
    %33 = vector.multi_reduction <maximumf>, %32, %cst_15 [1] : vector<16x16xf32> to vector<16xf32>
    %34 = vector.shape_cast %33 : vector<16xf32> to vector<16x1xf32>
    %35 = vector.broadcast %34 : vector<16x1xf32> to vector<16x16xf32>
    %36 = arith.subf %32, %35 : vector<16x16xf32>
    %37 = math.exp %36 : vector<16x16xf32>
    %cst_16 = arith.constant dense<0.000000e+00> : vector<16xf32>
    %38 = vector.multi_reduction <add>, %37, %cst_16 [1] : vector<16x16xf32> to vector<16xf32>
    %39 = vector.shape_cast %38 : vector<16xf32> to vector<16x1xf32>
    %40 = tpu.reciprocal %39 {approx = true} : vector<16x1xf32> -> vector<16x1xf32>
    %41 = vector.broadcast %40 : vector<16x1xf32> to vector<16x16xf32>
    %42 = arith.mulf %37, %41 : vector<16x16xf32>
    %cst_17 = arith.constant dense<0.000000e+00> : vector<16x16xf32>
    %43 = tpu.matmul %42, %27, %cst_17 {dimension_numbers = #tpu.dot_dimension_numbers<[1], [0], [0], [1], [0, 0, 1, 1], [], []>} : vector<16x16xf32>, vector<16x16xf32>, vector<16x16xf32> -> vector<16x16xf32>
    %44 = vector.extract_strided_slice %14 {offsets = [0, 16], sizes = [16, 16], strides = [1, 1]} : vector<16x96xf32> to vector<16x16xf32>
    %45 = vector.extract_strided_slice %14 {offsets = [0, 48], sizes = [16, 16], strides = [1, 1]} : vector<16x96xf32> to vector<16x16xf32>
    %46 = vector.extract_strided_slice %14 {offsets = [0, 80], sizes = [16, 16], strides = [1, 1]} : vector<16x96xf32> to vector<16x16xf32>
    %47 = tpu.transpose %45, [1, 0] : vector<16x16xf32> -> vector<16x16xf32>
    %cst_18 = arith.constant dense<0.000000e+00> : vector<16x16xf32>
    %48 = tpu.matmul %44, %47, %cst_18 {dimension_numbers = #tpu.dot_dimension_numbers<[1], [0], [0], [1], [0, 0, 1, 1], [], []>} : vector<16x16xf32>, vector<16x16xf32>, vector<16x16xf32> -> vector<16x16xf32>
    %cst_19 = arith.constant 2.500000e-01 : f32
    %49 = vector.broadcast %cst_19 : f32 to vector<16x16xf32>
    %50 = arith.mulf %48, %49 : vector<16x16xf32>
    %51 = arith.addf %50, %7 : vector<16x16xf32>
    %cst_20 = arith.constant dense<0xFF800000> : vector<16xf32>
    %52 = vector.multi_reduction <maximumf>, %51, %cst_20 [1] : vector<16x16xf32> to vector<16xf32>
    %53 = vector.shape_cast %52 : vector<16xf32> to vector<16x1xf32>
    %54 = vector.broadcast %53 : vector<16x1xf32> to vector<16x16xf32>
    %55 = arith.subf %51, %54 : vector<16x16xf32>
    %56 = math.exp %55 : vector<16x16xf32>
    %cst_21 = arith.constant dense<0.000000e+00> : vector<16xf32>
    %57 = vector.multi_reduction <add>, %56, %cst_21 [1] : vector<16x16xf32> to vector<16xf32>
    %58 = vector.shape_cast %57 : vector<16xf32> to vector<16x1xf32>
    %59 = tpu.reciprocal %58 {approx = true} : vector<16x1xf32> -> vector<16x1xf32>
    %60 = vector.broadcast %59 : vector<16x1xf32> to vector<16x16xf32>
    %61 = arith.mulf %56, %60 : vector<16x16xf32>
    %cst_22 = arith.constant dense<0.000000e+00> : vector<16x16xf32>
    %62 = tpu.matmul %61, %46, %cst_22 {dimension_numbers = #tpu.dot_dimension_numbers<[1], [0], [0], [1], [0, 0, 1, 1], [], []>} : vector<16x16xf32>, vector<16x16xf32>, vector<16x16xf32> -> vector<16x16xf32>
    %63 = tpu.concatenate %43, %62 in 1 : vector<16x16xf32>, vector<16x16xf32> -> vector<16x32xf32>
    %cst_23 = arith.constant dense<0.000000e+00> : vector<16x32xf32>
    %64 = tpu.matmul %63, %18, %cst_23 {dimension_numbers = #tpu.dot_dimension_numbers<[1], [0], [0], [1], [0, 0, 1, 1], [], []>} : vector<16x32xf32>, vector<32x32xf32>, vector<16x32xf32> -> vector<16x32xf32>
    %65 = vector.broadcast %19 : vector<1x32xf32> to vector<16x32xf32>
    %66 = arith.addf %64, %65 : vector<16x32xf32>
    %67 = arith.addf %66, %3 : vector<16x32xf32>
    %cst_24 = arith.constant dense<0.000000e+00> : vector<16xf32>
    %68 = vector.multi_reduction <add>, %67, %cst_24 [1] : vector<16x32xf32> to vector<16xf32>
    %69 = vector.shape_cast %68 : vector<16xf32> to vector<16x1xf32>
    %cst_25 = arith.constant 3.200000e+01 : f32
    %70 = vector.broadcast %cst_25 : f32 to vector<16x1xf32>
    %71 = arith.divf %69, %70 : vector<16x1xf32>
    %72 = vector.broadcast %71 : vector<16x1xf32> to vector<16x32xf32>
    %73 = arith.subf %67, %72 : vector<16x32xf32>
    %74 = arith.mulf %73, %73 : vector<16x32xf32>
    %cst_26 = arith.constant dense<0.000000e+00> : vector<16xf32>
    %75 = vector.multi_reduction <add>, %74, %cst_26 [1] : vector<16x32xf32> to vector<16xf32>
    %76 = vector.shape_cast %75 : vector<16xf32> to vector<16x1xf32>
    %cst_27 = arith.constant 3.200000e+01 : f32
    %77 = vector.broadcast %cst_27 : f32 to vector<16x1xf32>
    %78 = arith.divf %76, %77 : vector<16x1xf32>
    %79 = vector.broadcast %71 : vector<16x1xf32> to vector<16x32xf32>
    %80 = arith.subf %67, %79 : vector<16x32xf32>
    %cst_28 = arith.constant 9.99999974E-6 : f32
    %81 = vector.broadcast %cst_28 : f32 to vector<16x1xf32>
    %82 = arith.addf %78, %81 : vector<16x1xf32>
    %83 = math.rsqrt %82 : vector<16x1xf32>
    %84 = vector.broadcast %83 : vector<16x1xf32> to vector<16x32xf32>
    %85 = arith.mulf %80, %84 : vector<16x32xf32>
    %86 = vector.broadcast %20 : vector<1x32xf32> to vector<16x32xf32>
    %87 = arith.mulf %85, %86 : vector<16x32xf32>
    %88 = vector.broadcast %21 : vector<1x32xf32> to vector<16x32xf32>
    %89 = arith.addf %87, %88 : vector<16x32xf32>
    %90 = vector.broadcast %6 : vector<16x1xf32> to vector<16x32xf32>
    %91 = arith.mulf %89, %90 : vector<16x32xf32>
    %c0_29 = arith.constant 0 : index
    %c0_30 = arith.constant 0 : index
    %c0_31 = arith.constant 0 : index
    %92 = vector.load %arg5[%c0_29, %c0_30, %c0_31] : memref<1x289x64xf32, #tpu.memory_space<vmem>>, vector<1x289x64xf32>
    %93 = vector.shape_cast %92 : vector<1x289x64xf32> to vector<289x64xf32>
    %94 = vector.extract_strided_slice %93 {offsets = [0, 0], sizes = [288, 64], strides = [1, 1]} : vector<289x64xf32> to vector<288x64xf32>
    %95 = vector.extract_strided_slice %93 {offsets = [288, 0], sizes = [1, 64], strides = [1, 1]} : vector<289x64xf32> to vector<1x64xf32>
    %cst_32 = arith.constant 0.000000e+00 : f32
    %96 = vector.broadcast %cst_32 : f32 to vector<4x32xf32>
    %97 = vector.extract_strided_slice %91 {offsets = [0, 0], sizes = [8, 32], strides = [1, 1]} : vector<16x32xf32> to vector<8x32xf32>
    %98 = tpu.concatenate %96, %97, %96 in 0 : vector<4x32xf32>, vector<8x32xf32>, vector<4x32xf32> -> vector<16x32xf32>
    %99 = vector.extract_strided_slice %98 {offsets = [0, 0], sizes = [8, 32], strides = [1, 1]} : vector<16x32xf32> to vector<8x32xf32>
    %100 = vector.extract_strided_slice %98 {offsets = [1, 0], sizes = [8, 32], strides = [1, 1]} : vector<16x32xf32> to vector<8x32xf32>
    %101 = vector.extract_strided_slice %98 {offsets = [2, 0], sizes = [8, 32], strides = [1, 1]} : vector<16x32xf32> to vector<8x32xf32>
    %102 = vector.extract_strided_slice %98 {offsets = [3, 0], sizes = [8, 32], strides = [1, 1]} : vector<16x32xf32> to vector<8x32xf32>
    %103 = vector.extract_strided_slice %98 {offsets = [4, 0], sizes = [8, 32], strides = [1, 1]} : vector<16x32xf32> to vector<8x32xf32>
    %104 = vector.extract_strided_slice %98 {offsets = [5, 0], sizes = [8, 32], strides = [1, 1]} : vector<16x32xf32> to vector<8x32xf32>
    %105 = vector.extract_strided_slice %98 {offsets = [6, 0], sizes = [8, 32], strides = [1, 1]} : vector<16x32xf32> to vector<8x32xf32>
    %106 = vector.extract_strided_slice %98 {offsets = [7, 0], sizes = [8, 32], strides = [1, 1]} : vector<16x32xf32> to vector<8x32xf32>
    %107 = vector.extract_strided_slice %98 {offsets = [8, 0], sizes = [8, 32], strides = [1, 1]} : vector<16x32xf32> to vector<8x32xf32>
    %108 = tpu.concatenate %99, %100, %101, %102, %103, %104, %105, %106, %107 in 1 : vector<8x32xf32>, vector<8x32xf32>, vector<8x32xf32>, vector<8x32xf32>, vector<8x32xf32>, vector<8x32xf32>, vector<8x32xf32>, vector<8x32xf32>, vector<8x32xf32> -> vector<8x288xf32>
    %109 = vector.extract_strided_slice %91 {offsets = [8, 0], sizes = [8, 32], strides = [1, 1]} : vector<16x32xf32> to vector<8x32xf32>
    %110 = tpu.concatenate %96, %109, %96 in 0 : vector<4x32xf32>, vector<8x32xf32>, vector<4x32xf32> -> vector<16x32xf32>
    %111 = vector.extract_strided_slice %110 {offsets = [0, 0], sizes = [8, 32], strides = [1, 1]} : vector<16x32xf32> to vector<8x32xf32>
    %112 = vector.extract_strided_slice %110 {offsets = [1, 0], sizes = [8, 32], strides = [1, 1]} : vector<16x32xf32> to vector<8x32xf32>
    %113 = vector.extract_strided_slice %110 {offsets = [2, 0], sizes = [8, 32], strides = [1, 1]} : vector<16x32xf32> to vector<8x32xf32>
    %114 = vector.extract_strided_slice %110 {offsets = [3, 0], sizes = [8, 32], strides = [1, 1]} : vector<16x32xf32> to vector<8x32xf32>
    %115 = vector.extract_strided_slice %110 {offsets = [4, 0], sizes = [8, 32], strides = [1, 1]} : vector<16x32xf32> to vector<8x32xf32>
    %116 = vector.extract_strided_slice %110 {offsets = [5, 0], sizes = [8, 32], strides = [1, 1]} : vector<16x32xf32> to vector<8x32xf32>
    %117 = vector.extract_strided_slice %110 {offsets = [6, 0], sizes = [8, 32], strides = [1, 1]} : vector<16x32xf32> to vector<8x32xf32>
    %118 = vector.extract_strided_slice %110 {offsets = [7, 0], sizes = [8, 32], strides = [1, 1]} : vector<16x32xf32> to vector<8x32xf32>
    %119 = vector.extract_strided_slice %110 {offsets = [8, 0], sizes = [8, 32], strides = [1, 1]} : vector<16x32xf32> to vector<8x32xf32>
    %120 = tpu.concatenate %111, %112, %113, %114, %115, %116, %117, %118, %119 in 1 : vector<8x32xf32>, vector<8x32xf32>, vector<8x32xf32>, vector<8x32xf32>, vector<8x32xf32>, vector<8x32xf32>, vector<8x32xf32>, vector<8x32xf32>, vector<8x32xf32> -> vector<8x288xf32>
    %121 = tpu.concatenate %108, %120 in 0 : vector<8x288xf32>, vector<8x288xf32> -> vector<16x288xf32>
    %cst_33 = arith.constant dense<0.000000e+00> : vector<16x64xf32>
    %122 = tpu.matmul %121, %94, %cst_33 {dimension_numbers = #tpu.dot_dimension_numbers<[1], [0], [0], [1], [0, 0, 1, 1], [], []>} : vector<16x288xf32>, vector<288x64xf32>, vector<16x64xf32> -> vector<16x64xf32>
    %123 = vector.broadcast %95 : vector<1x64xf32> to vector<16x64xf32>
    %124 = arith.addf %122, %123 : vector<16x64xf32>
    %cst_34 = arith.constant 0.000000e+00 : f32
    %125 = vector.broadcast %cst_34 : f32 to vector<16x64xf32>
    %126 = arith.maximumf %124, %125 : vector<16x64xf32>
    %cst_35 = arith.constant dense<0.000000e+00> : vector<16x32xf32>
    %127 = tpu.matmul %126, %17, %cst_35 {dimension_numbers = #tpu.dot_dimension_numbers<[1], [0], [0], [1], [0, 0, 1, 1], [], []>} : vector<16x64xf32>, vector<64x32xf32>, vector<16x32xf32> -> vector<16x32xf32>
    %128 = vector.broadcast %22 : vector<1x32xf32> to vector<16x32xf32>
    %129 = arith.addf %127, %128 : vector<16x32xf32>
    %130 = arith.addf %129, %91 : vector<16x32xf32>
    %cst_36 = arith.constant dense<0.000000e+00> : vector<16xf32>
    %131 = vector.multi_reduction <add>, %130, %cst_36 [1] : vector<16x32xf32> to vector<16xf32>
    %132 = vector.shape_cast %131 : vector<16xf32> to vector<16x1xf32>
    %cst_37 = arith.constant 3.200000e+01 : f32
    %133 = vector.broadcast %cst_37 : f32 to vector<16x1xf32>
    %134 = arith.divf %132, %133 : vector<16x1xf32>
    %135 = vector.broadcast %134 : vector<16x1xf32> to vector<16x32xf32>
    %136 = arith.subf %130, %135 : vector<16x32xf32>
    %137 = arith.mulf %136, %136 : vector<16x32xf32>
    %cst_38 = arith.constant dense<0.000000e+00> : vector<16xf32>
    %138 = vector.multi_reduction <add>, %137, %cst_38 [1] : vector<16x32xf32> to vector<16xf32>
    %139 = vector.shape_cast %138 : vector<16xf32> to vector<16x1xf32>
    %cst_39 = arith.constant 3.200000e+01 : f32
    %140 = vector.broadcast %cst_39 : f32 to vector<16x1xf32>
    %141 = arith.divf %139, %140 : vector<16x1xf32>
    %142 = vector.broadcast %134 : vector<16x1xf32> to vector<16x32xf32>
    %143 = arith.subf %130, %142 : vector<16x32xf32>
    %cst_40 = arith.constant 9.99999974E-6 : f32
    %144 = vector.broadcast %cst_40 : f32 to vector<16x1xf32>
    %145 = arith.addf %141, %144 : vector<16x1xf32>
    %146 = math.rsqrt %145 : vector<16x1xf32>
    %147 = vector.broadcast %146 : vector<16x1xf32> to vector<16x32xf32>
    %148 = arith.mulf %143, %147 : vector<16x32xf32>
    %149 = vector.broadcast %23 : vector<1x32xf32> to vector<16x32xf32>
    %150 = arith.mulf %148, %149 : vector<16x32xf32>
    %151 = vector.broadcast %24 : vector<1x32xf32> to vector<16x32xf32>
    %152 = arith.addf %150, %151 : vector<16x32xf32>
    %153 = vector.broadcast %6 : vector<16x1xf32> to vector<16x32xf32>
    %154 = arith.mulf %152, %153 : vector<16x32xf32>
    %c0_41 = arith.constant 0 : index
    %c0_42 = arith.constant 0 : index
    %155 = vector.load %arg8[%c0_41, %c0_42] : memref<16x32xf32, #tpu.memory_space<vmem>>, vector<16x32xf32>
    tpu.vector_store %arg8[%c0_41, %c0_42], %154 {strides = array<i32>} : memref<16x32xf32, #tpu.memory_space<vmem>>, vector<16x32xf32>,
    %c0_43 = arith.constant 0 : index
    %c0_44 = arith.constant 0 : index
    %156 = vector.load %arg7[%c0_43, %c0_44] : memref<16x32xf32, #tpu.memory_space<vmem>>, vector<16x32xf32>
    tpu.vector_store %arg7[%c0_43, %c0_44], %154 {strides = array<i32>} : memref<16x32xf32, #tpu.memory_space<vmem>>, vector<16x32xf32>,
    return
  }
  func.func @transform_0(%arg0: i32) -> (i32, i32) {
    %c0_i32 = arith.constant 0 : i32
    %c0_i32_0 = arith.constant 0 : i32
    %c0_i32_1 = arith.constant 0 : i32
    return %c0_i32, %c0_i32_0 : i32, i32
  }
  func.func @transform_1(%arg0: i32) -> (i32, i32) {
    %c0_i32 = arith.constant 0 : i32
    %c0_i32_0 = arith.constant 0 : i32
    %c0_i32_1 = arith.constant 0 : i32
    return %c0_i32, %c0_i32_0 : i32, i32
  }
  func.func @transform_2(%arg0: i32) -> (i32, i32) {
    %c0_i32 = arith.constant 0 : i32
    %c0_i32_0 = arith.constant 0 : i32
    %c0_i32_1 = arith.constant 0 : i32
    return %c0_i32, %c0_i32_0 : i32, i32
  }
  func.func @transform_3(%arg0: i32) -> (i32, i32, i32) {
    %c0_i32 = arith.constant 0 : i32
    %c0_i32_0 = arith.constant 0 : i32
    %c0_i32_1 = arith.constant 0 : i32
    return %arg0, %c0_i32, %c0_i32_0 : i32, i32, i32
  }
  func.func @transform_4(%arg0: i32) -> (i32, i32, i32) {
    %c0_i32 = arith.constant 0 : i32
    %c0_i32_0 = arith.constant 0 : i32
    %c0_i32_1 = arith.constant 0 : i32
    return %arg0, %c0_i32, %c0_i32_0 : i32, i32, i32
  }
  func.func @transform_5(%arg0: i32) -> (i32, i32, i32) {
    %c0_i32 = arith.constant 0 : i32
    %c0_i32_0 = arith.constant 0 : i32
    %c0_i32_1 = arith.constant 0 : i32
    return %arg0, %c0_i32, %c0_i32_0 : i32, i32, i32
  }
  func.func @transform_6(%arg0: i32) -> (i32, i32) {
    %c0_i32 = arith.constant 0 : i32
    %c0_i32_0 = arith.constant 0 : i32
    %c0_i32_1 = arith.constant 0 : i32
    return %c0_i32, %c0_i32_0 : i32, i32
  }
}

</mosaic_0001>

<llo_original>
// kernel: tpu_custom_call.1
$region0: #{tpu_custom_call.1}
  #allocation0 [shape = 'u32[]', space=smem, size = 0x4, offset = 0x4, fixed_abs, tag = 'smem constant byte address 0x4 - core index']
  #allocation1 [shape = 'u32[72,128]{1,0:T(1,128)}', space=vmem, size = 0x9000, scoped, tag = 'internal scratch']
  #allocation2 [shape = 'f32[16,32]{1,0:T(8,128)}', space=vmem, size = 0x2000, scoped, tag = 'scratch operand']
  %s0 = inlined_call_operand.vmem [shape: f32[16,32], index: 0, kind: input, shape index: {}]
  %s1 = inlined_call_operand.vmem [shape: f32[16,16], index: 1, kind: input, shape index: {}]
  %s2 = inlined_call_operand.vmem [shape: f32[16,1], index: 2, kind: input, shape index: {}]
  %s3 = inlined_call_operand.vmem [shape: f32[2,33,96], index: 3, kind: input, shape index: {}]
  %s4 = inlined_call_operand.vmem [shape: f32[2,289,64], index: 4, kind: input, shape index: {}]
  %s5 = inlined_call_operand.vmem [shape: f32[2,102,32], index: 5, kind: input, shape index: {}]
  %s6 = inlined_call_operand.hbm [shape: f32[16,32], index: 6, kind: output, shape index: {}]
  %s7 = sld [smem:[#allocation0]]
  $region61: #{tpu_custom_call.1} parent=0
    _
  %s9 = ssub.s32 1, %s7
  %s10 = scalar_select 0, %s9, %s7
  $region1: #{tpu_custom_call.1} parent=0
    #allocation3 [shape = 'u8[8192]{0}', space=vmem, size = 0x2000, scoped, tag = 'output window, operand 0, single buffered']
    #allocation4 [shape = 's32[2]{0}', space=sflag, size = 0x8, scoped, tag = 'scoped memory for tpu_custom_call.1']
    %11 = vsyncpa [#allocation4], 0
    loop: start=0, step=1, limit=4
    $region2: #{tpu_custom_call.1} parent=1 // loop_pre_header
      _
    $region3: #{tpu_custom_call.1} parent=1 // loop_header
      %s13 = sphi 0, %s17
      %p14 = scmp.ge.s32.totalorder %s13, 4
      %s21 = sphi 0, %s21
      %s23 = sphi 0, %s21
      %s24 = sphi 0, %s23
      %s38 = sphi 0, %s24
      %s42 = sphi 0, %s42
      %s44 = sphi 0, %s42
      %s45 = sphi 0, %s44
      %s59 = sphi 0, %s45
      %s63 = sphi 0, %s63
      %s65 = sphi 0, %s63
      %s66 = sphi 0, %s65
      %s80 = sphi 0, %s66
      %s86 = sphi 0, %s88
      %s89 = sphi 0, %s86
      %s90 = sphi 0, %s89
      %s106 = sphi 0, %s90
      %s112 = sphi 0, %s114
      %s115 = sphi 0, %s112
      %s116 = sphi 0, %s115
      %s132 = sphi 0, %s116
      %s138 = sphi 0, %s140
      %s141 = sphi 0, %s138
      %s142 = sphi 0, %s141
      %s158 = sphi 0, %s142
      %s162 = sphi 0, %s162
      %s164 = sphi 0, %s162
      %s165 = sphi 0, %s164
      %s179 = sphi 0, %s165
    $region4: #{tpu_custom_call.1} parent=1 // loop_header_branch
      %16 = sbr.rel (%p14) target = $region8
    $region5: #{tpu_custom_call.1} parent=1 // loop_body
      %s18 = ssub.s32 %s13, 1
      %s19 = ssub.s32 %s13, 2
      %s20 = sadd.s32 %s13, 1
      %s22 = sadd.s32 %s21, 1
      %p25 = scmp.eq.s32.totalorder %s13, 1
      %p26 = scmp.ne.s32.totalorder %s21, %s23
      %p27 = scmp.eq.s32.totalorder %s13, 0
      %p28 = por %p26, %p27
      %p29 = scmp.ne.s32.totalorder %s21, %s23
      %p30 = scmp.eq.s32.totalorder %s18, 1
      %p31 = por %p29, %p30
      %p32 = scmp.ne.s32.totalorder %s23, %s24
      %p33 = scmp.eq.s32.totalorder %s18, 0
      %p34 = por %p32, %p33
      %p35 = scmp.ne.s32.totalorder %s23, %s24
      %p36 = scmp.eq.s32.totalorder %s19, 1
      %p37 = por %p35, %p36
      %p39 = scmp.ne.s32.totalorder %s24, %s38
      %p40 = scmp.eq.s32.totalorder %s19, 0
      %p41 = por %p39, %p40
      %s43 = sadd.s32 %s42, 1
      %p46 = scmp.eq.s32.totalorder %s13, 1
      %p47 = scmp.ne.s32.totalorder %s42, %s44
      %p48 = scmp.eq.s32.totalorder %s13, 0
      %p49 = por %p47, %p48
      %p50 = scmp.ne.s32.totalorder %s42, %s44
      %p51 = scmp.eq.s32.totalorder %s18, 1
      %p52 = por %p50, %p51
      %p53 = scmp.ne.s32.totalorder %s44, %s45
      %p54 = scmp.eq.s32.totalorder %s18, 0
      %p55 = por %p53, %p54
      %p56 = scmp.ne.s32.totalorder %s44, %s45
      %p57 = scmp.eq.s32.totalorder %s19, 1
      %p58 = por %p56, %p57
      %p60 = scmp.ne.s32.totalorder %s45, %s59
      %p61 = scmp.eq.s32.totalorder %s19, 0
      %p62 = por %p60, %p61
      %s64 = sadd.s32 %s63, 1
      %p67 = scmp.eq.s32.totalorder %s13, 1
      %p68 = scmp.ne.s32.totalorder %s63, %s65
      %p69 = scmp.eq.s32.totalorder %s13, 0
      %p70 = por %p68, %p69
      %p71 = scmp.ne.s32.totalorder %s63, %s65
      %p72 = scmp.eq.s32.totalorder %s18, 1
      %p73 = por %p71, %p72
      %p74 = scmp.ne.s32.totalorder %s65, %s66
      %p75 = scmp.eq.s32.totalorder %s18, 0
      %p76 = por %p74, %p75
      %p77 = scmp.ne.s32.totalorder %s65, %s66
      %p78 = scmp.eq.s32.totalorder %s19, 1
      %p79 = por %p77, %p78
      %p81 = scmp.ne.s32.totalorder %s66, %s80
      %p82 = scmp.eq.s32.totalorder %s19, 0
      %p83 = por %p81, %p82
      %s84 = ssub.s32 %s13, %s20
      %p85 = scmp.eq.s32.totalorder %s84, 0
      %s87 = sadd.s32 %s86, 1
      %s88 = scalar_select %p85, %s86, %s87
      %p91 = pneg %p85
      %p92 = scmp.eq.s32.totalorder %s13, 1
      %p93 = por %p91, %p92
      %p94 = scmp.ne.s32.totalorder %s86, %s89
      %p95 = scmp.eq.s32.totalorder %s13, 0
      %p96 = por %p94, %p95
      %p97 = scmp.ne.s32.totalorder %s86, %s89
      %p98 = scmp.eq.s32.totalorder %s18, 1
      %p99 = por %p97, %p98
      %p100 = scmp.ne.s32.totalorder %s89, %s90
      %p101 = scmp.eq.s32.totalorder %s18, 0
      %p102 = por %p100, %p101
      %p103 = scmp.ne.s32.totalorder %s89, %s90
      %p104 = scmp.eq.s32.totalorder %s19, 1
      %p105 = por %p103, %p104
      %p107 = scmp.ne.s32.totalorder %s90, %s106
      %p108 = scmp.eq.s32.totalorder %s19, 0
      %p109 = por %p107, %p108
      %s110 = ssub.s32 %s13, %s20
      %p111 = scmp.eq.s32.totalorder %s110, 0
      %s113 = sadd.s32 %s112, 1
      %s114 = scalar_select %p111, %s112, %s113
      %p117 = pneg %p111
      %p118 = scmp.eq.s32.totalorder %s13, 1
      %p119 = por %p117, %p118
      %p120 = scmp.ne.s32.totalorder %s112, %s115
      %p121 = scmp.eq.s32.totalorder %s13, 0
      %p122 = por %p120, %p121
      %p123 = scmp.ne.s32.totalorder %s112, %s115
      %p124 = scmp.eq.s32.totalorder %s18, 1
      %p125 = por %p123, %p124
      %p126 = scmp.ne.s32.totalorder %s115, %s116
      %p127 = scmp.eq.s32.totalorder %s18, 0
      %p128 = por %p126, %p127
      %p129 = scmp.ne.s32.totalorder %s115, %s116
      %p130 = scmp.eq.s32.totalorder %s19, 1
      %p131 = por %p129, %p130
      %p133 = scmp.ne.s32.totalorder %s116, %s132
      %p134 = scmp.eq.s32.totalorder %s19, 0
      %p135 = por %p133, %p134
      %s136 = ssub.s32 %s13, %s20
      %p137 = scmp.eq.s32.totalorder %s136, 0
      %s139 = sadd.s32 %s138, 1
      %s140 = scalar_select %p137, %s138, %s139
      %p143 = pneg %p137
      %p144 = scmp.eq.s32.totalorder %s13, 1
      %p145 = por %p143, %p144
      %p146 = scmp.ne.s32.totalorder %s138, %s141
      %p147 = scmp.eq.s32.totalorder %s13, 0
      %p148 = por %p146, %p147
      %p149 = scmp.ne.s32.totalorder %s138, %s141
      %p150 = scmp.eq.s32.totalorder %s18, 1
      %p151 = por %p149, %p150
      %p152 = scmp.ne.s32.totalorder %s141, %s142
      %p153 = scmp.eq.s32.totalorder %s18, 0
      %p154 = por %p152, %p153
      %p155 = scmp.ne.s32.totalorder %s141, %s142
      %p156 = scmp.eq.s32.totalorder %s19, 1
      %p157 = por %p155, %p156
      %p159 = scmp.ne.s32.totalorder %s142, %s158
      %p160 = scmp.eq.s32.totalorder %s19, 0
      %p161 = por %p159, %p160
      %s163 = sadd.s32 %s162, 1
      %p166 = scmp.eq.s32.totalorder %s13, 1
      %p167 = scmp.ne.s32.totalorder %s162, %s164
      %p168 = scmp.eq.s32.totalorder %s13, 0
      %p169 = por %p167, %p168
      %p170 = scmp.ne.s32.totalorder %s162, %s164
      %p171 = scmp.eq.s32.totalorder %s18, 1
      %p172 = por %p170, %p171
      %p173 = scmp.ne.s32.totalorder %s164, %s165
      %p174 = scmp.eq.s32.totalorder %s18, 0
      %p175 = por %p173, %p174
      %p176 = scmp.ne.s32.totalorder %s164, %s165
      %p177 = scmp.eq.s32.totalorder %s19, 1
      %p178 = por %p176, %p177
      %p180 = scmp.ne.s32.totalorder %s165, %s179
      %p181 = scmp.eq.s32.totalorder %s19, 0
      %p182 = por %p180, %p181
      %p183 = scmp.le.s32.totalorder 1, %s13
      %p184 = scmp.lt.s32.totalorder %s13, 3
      %p185 = pnand %p183, %p184
      %p186 = pneg %p185
      // Predicated region
      $region9: #{tpu_custom_call.1} parent=5 // pred_check
        _
      $region10: #{tpu_custom_call.1} parent=5 // pred_check_branch
        %188 = sbr.rel (%p185) target = $region12
      $region11: #{tpu_custom_call.1} parent=5 // pred_region
        %s189 = ssub.s32 %s13, 1
        // Predicated region
        $region13: #{tpu_custom_call.1} parent=11 // pred_check
          %p190 = pneg %p34
        $region14: #{tpu_custom_call.1} parent=11 // pred_check_branch
          %192 = sbr.rel (%p190) target = $region16
        $region15: #{tpu_custom_call.1} parent=11 // pred_region
          _
        $region16: #{tpu_custom_call.1} parent=11 // pred_fallthru
          _
        // Predicated region
        $region17: #{tpu_custom_call.1} parent=11 // pred_check
          %p193 = pneg %p55
        $region18: #{tpu_custom_call.1} parent=11 // pred_check_branch
          %195 = sbr.rel (%p193) target = $region20
        $region19: #{tpu_custom_call.1} parent=11 // pred_region
          _
        $region20: #{tpu_custom_call.1} parent=11 // pred_fallthru
          _
        // Predicated region
        $region21: #{tpu_custom_call.1} parent=11 // pred_check
          %p196 = pneg %p76
        $region22: #{tpu_custom_call.1} parent=11 // pred_check_branch
          %198 = sbr.rel (%p196) target = $region24
        $region23: #{tpu_custom_call.1} parent=11 // pred_region
          _
        $region24: #{tpu_custom_call.1} parent=11 // pred_fallthru
          _
      $region12: #{tpu_custom_call.1} parent=5 // pred_fallthru
        _
      %p199 = scmp.lt.s32.totalorder %s13, 2
      // Predicated region
      $region25: #{tpu_custom_call.1} parent=5 // pred_check
        %p200 = pneg %p199
      $region26: #{tpu_custom_call.1} parent=5 // pred_check_branch
        %202 = sbr.rel (%p200) target = $region28
      $region27: #{tpu_custom_call.1} parent=5 // pred_region
        // Predicated region
        $region29: #{tpu_custom_call.1} parent=27 // pred_check
          %p203 = pneg %p96
        $region30: #{tpu_custom_call.1} parent=27 // pred_check_branch
          %205 = sbr.rel (%p203) target = $region32
        $region31: #{tpu_custom_call.1} parent=27 // pred_region
          %p206 = scmp.lt.s32.totalorder %s13, 1
          %s207 = scalar_select %p206, %s13, 1
          %s208 = smul.addr %s207, 5
          %s209 = smul.addr %s208, 8
          %s210 = scalar_lea.vmem %s3, %s209
        $region32: #{tpu_custom_call.1} parent=27 // pred_fallthru
          _
        // Predicated region
        $region33: #{tpu_custom_call.1} parent=27 // pred_check
          %p211 = pneg %p122
        $region34: #{tpu_custom_call.1} parent=27 // pred_check_branch
          %213 = sbr.rel (%p211) target = $region36
        $region35: #{tpu_custom_call.1} parent=27 // pred_region
          %p214 = scmp.lt.s32.totalorder %s13, 1
          %s215 = scalar_select %p214, %s13, 1
          %s216 = smul.addr %s215, 37
          %s217 = smul.addr %s216, 8
          %s218 = scalar_lea.vmem %s4, %s217
        $region36: #{tpu_custom_call.1} parent=27 // pred_fallthru
          _
        // Predicated region
        $region37: #{tpu_custom_call.1} parent=27 // pred_check
          %p219 = pneg %p148
        $region38: #{tpu_custom_call.1} parent=27 // pred_check_branch
          %221 = sbr.rel (%p219) target = $region40
        $region39: #{tpu_custom_call.1} parent=27 // pred_region
          %p222 = scmp.lt.s32.totalorder %s13, 1
          %s223 = scalar_select %p222, %s13, 1
          %s224 = smul.addr %s223, 13
          %s225 = smul.addr %s224, 8
          %s226 = scalar_lea.vmem %s5, %s225
        $region40: #{tpu_custom_call.1} parent=27 // pred_fallthru
          _
      $region28: #{tpu_custom_call.1} parent=5 // pred_fallthru
        _
      %p227 = scmp.le.s32.totalorder 1, %s13
      %p228 = scmp.lt.s32.totalorder %s13, 3
      %p229 = pnand %p227, %p228
      %p230 = pneg %p229
      // Predicated region
      $region41: #{tpu_custom_call.1} parent=5 // pred_check
        _
      $region42: #{tpu_custom_call.1} parent=5 // pred_check_branch
        %232 = sbr.rel (%p229) target = $region44
      $region43: #{tpu_custom_call.1} parent=5 // pred_region
        %s233 = ssub.s32 %s13, 1
        %p234 = pneg %p34
        %p235 = pneg %p31
        %p236 = pneg %p55
        %p237 = pneg %p52
        %p238 = pneg %p76
        %p239 = pneg %p73
        %p240 = scmp.lt.s32.totalorder %s18, 1
        %s241 = scalar_select %p240, %s18, 1
        %s242 = smul.addr %s241, 5
        %s243 = smul.addr %s242, 8
        %s244 = scalar_lea.vmem %s3, %s243
        %p245 = pneg %p102
        %p246 = pneg %p99
        %p247 = scmp.lt.s32.totalorder %s18, 1
        %s248 = scalar_select %p247, %s18, 1
        %s249 = smul.addr %s248, 37
        %s250 = smul.addr %s249, 8
        %s251 = scalar_lea.vmem %s4, %s250
        %p252 = pneg %p128
        %p253 = pneg %p125
        %p254 = scmp.lt.s32.totalorder %s18, 1
        %s255 = scalar_select %p254, %s18, 1
        %s256 = smul.addr %s255, 13
        %s257 = smul.addr %s256, 8
        %s258 = scalar_lea.vmem %s5, %s257
        %p259 = pneg %p154
        %p260 = pneg %p151
        %p261 = pneg %p175
        %p262 = pneg %p172
        %p263 = scmp.lt.s32.totalorder %s18, 1
        %s264 = scalar_select %p263, %s18, 1
        %s265 = smul.addr %s264, 5
        %s266 = smul.addr %s265, 8
        %s267 = scalar_lea.vmem %s3, %s266
        %p268 = scmp.lt.s32.totalorder %s18, 1
        %s269 = scalar_select %p268, %s18, 1
        %s270 = smul.addr %s269, 37
        %s271 = smul.addr %s270, 8
        %s272 = scalar_lea.vmem %s4, %s271
        %p273 = scmp.lt.s32.totalorder %s18, 1
        %s274 = scalar_select %p273, %s18, 1
        %s275 = smul.addr %s274, 13
        %s276 = smul.addr %s275, 8
        %s277 = scalar_lea.vmem %s5, %s276
        %p278 = scmp.eq.s32.totalorder %s18, 0
        // Predicated region
        $region45: #{tpu_custom_call.1} parent=43 // pred_check
          %p279 = pneg %p278
        $region46: #{tpu_custom_call.1} parent=43 // pred_check_branch
          %281 = sbr.rel (%p279) target = $region48
        $region47: #{tpu_custom_call.1} parent=43 // pred_region
          %v282 = vld [vmem:[%s0] sm:$0xff]
          %v283 = vld [vmem:[%s0 + $0x8] sm:$0xff]
          %vm284 = vcmask 261120
          %285 = vst.msk [vmem:[#allocation2] sm:$0xff] %vm284, %v282
          %286 = vst.msk [vmem:[#allocation2 + $0x8] sm:$0xff] %vm284, %v283
        $region48: #{tpu_custom_call.1} parent=43 // pred_fallthru
          _
        %v287 = vld [vmem:[#allocation2] sm:$0xff]
        %v288 = vld [vmem:[#allocation2 + $0x8] sm:$0xff]
        %v289 = vld [vmem:[%s2] sm:$0xff]
        %v290 = vld [vmem:[%s2 + $0x8] sm:$0xff]
        %v291 = vsub.f32 1.0, %v289
        %v292 = vsub.f32 1.0, %v290
        %v293 = vld [vmem:[%s1] sm:$0xff]
        %v294 = vld [vmem:[%s1 + $0x8] sm:$0xff]
        %v295 = vld [vmem:[%s267] sm:$0xff]
        %v296 = vld [vmem:[%s267 + $0x8] sm:$0xff]
        %v297 = vld [vmem:[%s267 + $0x10] sm:$0xff]
        %v298 = vld [vmem:[%s267 + $0x18] sm:$0xff]
        %v299 = vld [vmem:[%s267 + $0x20] sm:$0x1]
        %v300 = vperm.slane %v299, 0
        %vm301 = vcmask 261120
        %v303 = vsel %vm301, %v287, 0
        %v306 = vsel %vm301, %v288, 0
        %308 = vmatpush.msra.mxu0 0.0
        %309 = vmatpush.msra.mxu0 0.0
        %310 = vmatpush.msra.mxu0 0.0
        %311 = vmatpush.msra.mxu0 0.0
        %312 = vmatpush.msra.mxu0 0.0
        %313 = vmatpush.msra.mxu0 0.0
        %314 = vmatpush.msra.mxu0 0.0
        %315 = vmatpush.msra.mxu0 0.0
        %316 = vmatpush.msra.mxu0 0.0
        %317 = vmatpush.msra.mxu0 0.0
        %318 = vmatpush.msra.mxu0 0.0
        %319 = vmatpush.msra.mxu0 0.0
        %320 = vmatpush.msra.mxu0 %v298
        %321 = vmatpush.msra.mxu0 %v297
        %322 = vmatpush.msra.mxu0 %v296
        %323 = vmatpush.msra.mxu0 %v295
        %324 = vmatmul.f32.gmra.mxu0 %v303
        %v325 = vpop.f32.mrf.mxu0
        %v326 = vadd.f32 %v300, %v325
        %327 = vmatmul.f32.gmra.mxu0 %v306
        %v328 = vpop.f32.mrf.mxu0
        %v329 = vadd.f32 %v300, %v328
        %330 = vdwg.mxu0
        %v331 = vld [vmem:[%s277] sm:$0xff]
        %v332 = vld [vmem:[%s277 + $0x8] sm:$0xff]
        %v333 = vld [vmem:[%s277 + $0x10] sm:$0xff]
        %v334 = vld [vmem:[%s277 + $0x18] sm:$0xff]
        %v335 = vld [vmem:[%s277 + $0x20] sm:$0xff]
        %v336 = vld [vmem:[%s277 + $0x28] sm:$0xff]
        %v337 = vld [vmem:[%s277 + $0x30] sm:$0xff]
        %v338 = vld [vmem:[%s277 + $0x38] sm:$0xff]
        %v339 = vld [vmem:[%s277 + $0x40] sm:$0xff]
        %v340 = vld [vmem:[%s277 + $0x48] sm:$0xff]
        %v341 = vld [vmem:[%s277 + $0x50] sm:$0xff]
        %v342 = vld [vmem:[%s277 + $0x58] sm:$0xff]
        %v343 = vld [vmem:[%s277 + $0x60] sm:$0x3f]
        %346 = vrot.lane.b32.xlu0 %v326, 96
        %v347 = vpop.permute.xlu0 %346
        %348 = vrot.lane.b32.xlu0 %v329, 96
        %v349 = vpop.permute.xlu0 %348
        %vm350 = vcmask 130048
        %v351 = vsel %vm350, %v326, 0
        %v353 = vsel %vm350, %v329, 0
        %v355 = vsel %vm350, %v347, 0
        %v357 = vsel %vm350, %v349, 0
        %359 = vmatpush.xpose.msra.mxu0 0.0
        %360 = vmatpush.xpose.msra.mxu0 0.0
        %361 = vmatpush.xpose.msra.mxu0 0.0
        %362 = vmatpush.xpose.msra.mxu0 0.0
        %363 = vmatpush.xpose.msra.mxu0 0.0
        %364 = vmatpush.xpose.msra.mxu0 0.0
        %365 = vmatpush.xpose.msra.mxu0 0.0
        %366 = vmatpush.xpose.msra.mxu0 0.0
        %367 = vmatpush.xpose.msra.mxu0 0.0
        %368 = vmatpush.xpose.msra.mxu0 0.0
        %369 = vmatpush.xpose.msra.mxu0 0.0
        %370 = vmatpush.xpose.msra.mxu0 0.0
        %371 = vmatpush.xpose.msra.mxu0 0.0
        %372 = vmatpush.xpose.msra.mxu0 0.0
        %373 = vmatpush.xpose.msra.mxu0 %v357
        %374 = vmatpush.xpose.msra.mxu0 %v355
        %375 = vmatmul.f32.gmra.mxu0 %v351
        %v376 = vpop.f32.mrf.mxu0
        %v377 = vadd.f32 0.0, %v376
        %378 = vmatmul.f32.gmra.mxu0 %v353
        %v379 = vpop.f32.mrf.mxu0
        %v380 = vadd.f32 0.0, %v379
        %381 = vdwg.mxu0
        %v382 = vmul.f32 %v377, 0.25
        %v383 = vmul.f32 %v380, 0.25
        %v384 = vadd.f32 %v382, %v293
        %v385 = vadd.f32 %v383, %v294
        %v386 = vsel %vm350, %v384, -inf
        %387 = vmax.xlane.f32.xlu0 %v386
        %v388 = vpop.xlane.xlu0 %387
        %v389 = vsel %vm350, %v385, -inf
        %390 = vmax.xlane.f32.xlu0 %v389
        %v391 = vpop.xlane.xlu0 %390
        %v392 = vsub.f32 %v384, %v388
        %v393 = vsub.f32 %v385, %v391
        %v394 = vmul.f32 %v392, 1.442695
        %v395 = vpow.pop %v394
        %v396 = vmul.f32 %v393, 1.442695
        %v397 = vpow.pop %v396
        %v398 = vsel %vm350, %v395, 0.0
        %399 = vadd.xlane.f32.xlu0 %v398
        %v400 = vpop.xlane.xlu0 %399
        %v401 = vsel %vm350, %v397, 0.0
        %402 = vadd.xlane.f32.xlu0 %v401
        %v403 = vpop.xlane.xlu0 %402
        %v404 = vrcp.pop %v400
        %v405 = vrcp.pop %v403
        %v406 = vmul.f32 %v395, %v404
        %v407 = vmul.f32 %v397, %v405
        %408 = vrot.lane.b32.xlu0 %v326, 64
        %v409 = vpop.permute.xlu0 %408
        %410 = vrot.lane.b32.xlu0 %v329, 64
        %v411 = vpop.permute.xlu0 %410
        %v415 = vsel %vm350, %v406, 0
        %v418 = vsel %vm350, %v407, 0
        %420 = vmatpush.msra.mxu0 0.0
        %421 = vmatpush.msra.mxu0 0.0
        %422 = vmatpush.msra.mxu0 0.0
        %423 = vmatpush.msra.mxu0 0.0
        %424 = vmatpush.msra.mxu0 0.0
        %425 = vmatpush.msra.mxu0 0.0
        %426 = vmatpush.msra.mxu0 0.0
        %427 = vmatpush.msra.mxu0 0.0
        %428 = vmatpush.msra.mxu0 0.0
        %429 = vmatpush.msra.mxu0 0.0
        %430 = vmatpush.msra.mxu0 0.0
        %431 = vmatpush.msra.mxu0 0.0
        %432 = vmatpush.msra.mxu0 0.0
        %433 = vmatpush.msra.mxu0 0.0
        %434 = vmatpush.msra.mxu0 %v411
        %435 = vmatpush.msra.mxu0 %v409
        %436 = vmatmul.f32.gmra.mxu0 %v415
        %v437 = vpop.f32.mrf.mxu0
        %v438 = vadd.f32 0.0, %v437
        %439 = vmatmul.f32.gmra.mxu0 %v418
        %v440 = vpop.f32.mrf.mxu0
        %v441 = vadd.f32 0.0, %v440
        %442 = vdwg.mxu0
        %443 = vrot.lane.b32.xlu0 %v326, 112
        %v444 = vpop.permute.xlu0 %443
        %445 = vrot.lane.b32.xlu0 %v329, 112
        %v446 = vpop.permute.xlu0 %445
        %447 = vrot.lane.b32.xlu0 %v326, 80
        %v448 = vpop.permute.xlu0 %447
        %449 = vrot.lane.b32.xlu0 %v329, 80
        %v450 = vpop.permute.xlu0 %449
        %v451 = vsel %vm350, %v444, 0
        %v453 = vsel %vm350, %v446, 0
        %v455 = vsel %vm350, %v448, 0
        %v457 = vsel %vm350, %v450, 0
        %459 = vmatpush.xpose.msra.mxu0 0.0
        %460 = vmatpush.xpose.msra.mxu0 0.0
        %461 = vmatpush.xpose.msra.mxu0 0.0
        %462 = vmatpush.xpose.msra.mxu0 0.0
        %463 = vmatpush.xpose.msra.mxu0 0.0
        %464 = vmatpush.xpose.msra.mxu0 0.0
        %465 = vmatpush.xpose.msra.mxu0 0.0
        %466 = vmatpush.xpose.msra.mxu0 0.0
        %467 = vmatpush.xpose.msra.mxu0 0.0
        %468 = vmatpush.xpose.msra.mxu0 0.0
        %469 = vmatpush.xpose.msra.mxu0 0.0
        %470 = vmatpush.xpose.msra.mxu0 0.0
        %471 = vmatpush.xpose.msra.mxu0 0.0
        %472 = vmatpush.xpose.msra.mxu0 0.0
        %473 = vmatpush.xpose.msra.mxu0 %v457
        %474 = vmatpush.xpose.msra.mxu0 %v455
        %475 = vmatmul.f32.gmra.mxu0 %v451
        %v476 = vpop.f32.mrf.mxu0
        %v477 = vadd.f32 0.0, %v476
        %478 = vmatmul.f32.gmra.mxu0 %v453
        %v479 = vpop.f32.mrf.mxu0
        %v480 = vadd.f32 0.0, %v479
        %481 = vdwg.mxu0
        %v482 = vmul.f32 %v477, 0.25
        %v483 = vmul.f32 %v480, 0.25
        %v484 = vadd.f32 %v482, %v293
        %v485 = vadd.f32 %v483, %v294
        %v486 = vsel %vm350, %v484, -inf
        %487 = vmax.xlane.f32.xlu0 %v486
        %v488 = vpop.xlane.xlu0 %487
        %v489 = vsel %vm350, %v485, -inf
        %490 = vmax.xlane.f32.xlu0 %v489
        %v491 = vpop.xlane.xlu0 %490
        %v492 = vsub.f32 %v484, %v488
        %v493 = vsub.f32 %v485, %v491
        %v494 = vmul.f32 %v492, 1.442695
        %v495 = vpow.pop %v494
        %v496 = vmul.f32 %v493, 1.442695
        %v497 = vpow.pop %v496
        %v498 = vsel %vm350, %v495, 0.0
        %499 = vadd.xlane.f32.xlu0 %v498
        %v500 = vpop.xlane.xlu0 %499
        %v501 = vsel %vm350, %v497, 0.0
        %502 = vadd.xlane.f32.xlu0 %v501
        %v503 = vpop.xlane.xlu0 %502
        %v504 = vrcp.pop %v500
        %v505 = vrcp.pop %v503
        %v506 = vmul.f32 %v495, %v504
        %v507 = vmul.f32 %v497, %v505
        %508 = vrot.lane.b32.xlu0 %v326, 48
        %v509 = vpop.permute.xlu0 %508
        %510 = vrot.lane.b32.xlu0 %v329, 48
        %v511 = vpop.permute.xlu0 %510
        %v515 = vsel %vm350, %v506, 0
        %v518 = vsel %vm350, %v507, 0
        %520 = vmatpush.msra.mxu0 0.0
        %521 = vmatpush.msra.mxu0 0.0
        %522 = vmatpush.msra.mxu0 0.0
        %523 = vmatpush.msra.mxu0 0.0
        %524 = vmatpush.msra.mxu0 0.0
        %525 = vmatpush.msra.mxu0 0.0
        %526 = vmatpush.msra.mxu0 0.0
        %527 = vmatpush.msra.mxu0 0.0
        %528 = vmatpush.msra.mxu0 0.0
        %529 = vmatpush.msra.mxu0 0.0
        %530 = vmatpush.msra.mxu0 0.0
        %531 = vmatpush.msra.mxu0 0.0
        %532 = vmatpush.msra.mxu0 0.0
        %533 = vmatpush.msra.mxu0 0.0
        %534 = vmatpush.msra.mxu0 %v511
        %535 = vmatpush.msra.mxu0 %v509
        %536 = vmatmul.f32.gmra.mxu0 %v515
        %v537 = vpop.f32.mrf.mxu0
        %v538 = vadd.f32 0.0, %v537
        %539 = vmatmul.f32.gmra.mxu0 %v518
        %v540 = vpop.f32.mrf.mxu0
        %v541 = vadd.f32 0.0, %v540
        %542 = vdwg.mxu0
        %545 = vrot.lane.b32.xlu0 %v538, 16
        %v546 = vpop.permute.xlu0 %545
        %547 = vrot.lane.b32.xlu0 %v541, 16
        %v548 = vpop.permute.xlu0 %547
        %v551 = vsel %vm350, %v438, %v546
        %v552 = vsel %vm350, %v441, %v548
        %v553 = vperm.slane %v343, 0
        %v555 = vsel %vm301, %v551, 0
        %v558 = vsel %vm301, %v552, 0
        %560 = vmatpush.msra.mxu0 0.0
        %561 = vmatpush.msra.mxu0 0.0
        %562 = vmatpush.msra.mxu0 0.0
        %563 = vmatpush.msra.mxu0 0.0
        %564 = vmatpush.msra.mxu0 0.0
        %565 = vmatpush.msra.mxu0 0.0
        %566 = vmatpush.msra.mxu0 0.0
        %567 = vmatpush.msra.mxu0 0.0
        %568 = vmatpush.msra.mxu0 0.0
        %569 = vmatpush.msra.mxu0 0.0
        %570 = vmatpush.msra.mxu0 0.0
        %571 = vmatpush.msra.mxu0 0.0
        %572 = vmatpush.msra.mxu0 %v342
        %573 = vmatpush.msra.mxu0 %v341
        %574 = vmatpush.msra.mxu0 %v340
        %575 = vmatpush.msra.mxu0 %v339
        %576 = vmatmul.f32.gmra.mxu0 %v555
        %v577 = vpop.f32.mrf.mxu0
        %v578 = vadd.f32 %v553, %v577
        %579 = vmatmul.f32.gmra.mxu0 %v558
        %v580 = vpop.f32.mrf.mxu0
        %v581 = vadd.f32 %v553, %v580
        %582 = vdwg.mxu0
        %v583 = vadd.f32 %v578, %v287
        %v584 = vadd.f32 %v581, %v288
        %v585 = vsel %vm301, %v583, 0.0
        %586 = vadd.xlane.f32.xlu0 %v585
        %v587 = vpop.xlane.xlu0 %586
        %v588 = vsel %vm301, %v584, 0.0
        %589 = vadd.xlane.f32.xlu0 %v588
        %v590 = vpop.xlane.xlu0 %589
        %v591 = vrcp.pop 32.0
        %v592 = vmul.f32 32.0, %v591
        %v593 = vsub.f32 1.0, %v592
        %v594 = vmul.f32 %v591, %v593
        %v595 = vadd.f32 %v591, %v594
        %vm596 = vweird.f32 %v591
        %v597 = vsel %vm596, %v591, %v595
        %v598 = vmul.f32 %v587, %v597
        %v599 = vmul.f32 %v590, %v597
        %v600 = vsub.f32 %v583, %v598
        %v601 = vsub.f32 %v584, %v599
        %v602 = vmul.f32 %v600, %v600
        %v603 = vmul.f32 %v601, %v601
        %v604 = vsel %vm301, %v602, 0.0
        %605 = vadd.xlane.f32.xlu0 %v604
        %v606 = vpop.xlane.xlu0 %605
        %v607 = vsel %vm301, %v603, 0.0
        %608 = vadd.xlane.f32.xlu0 %v607
        %v609 = vpop.xlane.xlu0 %608
        %v610 = vmul.f32 %v606, %v597
        %v611 = vmul.f32 %v609, %v597
        %v612 = vadd.f32 %v610, 1e-05
        %v613 = vadd.f32 %v611, 1e-05
        %v614 = vrsqrt.pop %v612
        %v615 = vmul.f32 %v614, %v612
        %v616 = vmul.f32 %v615, %v614
        %v617 = vmul.f32 0.5, %v616
        %v618 = vsub.f32 1.5, %v617
        %v619 = vmul.f32 %v614, %v618
        %vm620 = vweird.f32 %v612
        %vm621 = vweird.f32 %v614
        %vm622 = vmor %vm620, %vm621
        %v623 = vsel %vm622, %v614, %v619
        %v624 = vrsqrt.pop %v613
        %v625 = vmul.f32 %v624, %v613
        %v626 = vmul.f32 %v625, %v624
        %v627 = vmul.f32 0.5, %v626
        %v628 = vsub.f32 1.5, %v627
        %v629 = vmul.f32 %v624, %v628
        %vm630 = vweird.f32 %v613
        %vm631 = vweird.f32 %v624
        %vm632 = vmor %vm630, %vm631
        %v633 = vsel %vm632, %v624, %v629
        %v634 = vmul.f32 %v600, %v623
        %v635 = vmul.f32 %v601, %v633
        %v636 = vperm.slane %v343, 1
        %v637 = vmul.f32 %v634, %v636
        %v638 = vmul.f32 %v635, %v636
        %v639 = vperm.slane %v343, 2
        %v640 = vadd.f32 %v637, %v639
        %v641 = vadd.f32 %v638, %v639
        %643 = vset.pattern.permute.xlu0 0
        %644 = vperm.xlu0 %643, %v291
        %v645 = vpop.permute.xlu0 %644
        %648 = vset.pattern.permute.xlu0 0
        %649 = vperm.xlu0 %648, %v292
        %v650 = vpop.permute.xlu0 %649
        %v652 = vmul.f32 %v640, %v645
        %v653 = vmul.f32 %v641, %v650
        %v654 = vld [vmem:[%s272] sm:$0xff]
        %v655 = vld [vmem:[%s272 + $0x8] sm:$0xff]
        %v656 = vld [vmem:[%s272 + $0x10] sm:$0xff]
        %v657 = vld [vmem:[%s272 + $0x18] sm:$0xff]
        %v658 = vld [vmem:[%s272 + $0x20] sm:$0xff]
        %v659 = vld [vmem:[%s272 + $0x28] sm:$0xff]
        %v660 = vld [vmem:[%s272 + $0x30] sm:$0xff]
        %v661 = vld [vmem:[%s272 + $0x38] sm:$0xff]
        %v662 = vld [vmem:[%s272 + $0x40] sm:$0xff]
        %v663 = vld [vmem:[%s272 + $0x48] sm:$0xff]
        %v664 = vld [vmem:[%s272 + $0x50] sm:$0xff]
        %v665 = vld [vmem:[%s272 + $0x58] sm:$0xff]
        %v666 = vld [vmem:[%s272 + $0x60] sm:$0xff]
        %v667 = vld [vmem:[%s272 + $0x68] sm:$0xff]
        %v668 = vld [vmem:[%s272 + $0x70] sm:$0xff]
        %v669 = vld [vmem:[%s272 + $0x78] sm:$0xff]
        %v670 = vld [vmem:[%s272 + $0x80] sm:$0xff]
        %v671 = vld [vmem:[%s272 + $0x88] sm:$0xff]
        %v672 = vld [vmem:[%s272 + $0x90] sm:$0xff]
        %v673 = vld [vmem:[%s272 + $0x98] sm:$0xff]
        %v674 = vld [vmem:[%s272 + $0xa0] sm:$0xff]
        %v675 = vld [vmem:[%s272 + $0xa8] sm:$0xff]
        %v676 = vld [vmem:[%s272 + $0xb0] sm:$0xff]
        %v677 = vld [vmem:[%s272 + $0xb8] sm:$0xff]
        %v678 = vld [vmem:[%s272 + $0xc0] sm:$0xff]
        %v679 = vld [vmem:[%s272 + $0xc8] sm:$0xff]
        %v680 = vld [vmem:[%s272 + $0xd0] sm:$0xff]
        %v681 = vld [vmem:[%s272 + $0xd8] sm:$0xff]
        %v682 = vld [vmem:[%s272 + $0xe0] sm:$0xff]
        %v683 = vld [vmem:[%s272 + $0xe8] sm:$0xff]
        %v684 = vld [vmem:[%s272 + $0xf0] sm:$0xff]
        %v685 = vld [vmem:[%s272 + $0xf8] sm:$0xff]
        %v686 = vld [vmem:[%s272 + $0x100] sm:$0xff]
        %v687 = vld [vmem:[%s272 + $0x108] sm:$0xff]
        %v688 = vld [vmem:[%s272 + $0x110] sm:$0xff]
        %v689 = vld [vmem:[%s272 + $0x118] sm:$0xff]
        %v690 = vld [vmem:[%s272 + $0x120] sm:$0x1]
        %v692 = vrot.slane %v652, 4
        %vm694 = vcmask 1043456
        %v695 = vsel %vm694, 0.0, %v692
        %v696 = vsel %vm694, %v692, 0.0
        %vm699 = vcmask 1046528
        %v700 = vrot.slane %v695, 1
        %v701 = vrot.slane %v696, 1
        %v702 = vsel %vm699, %v700, %v701
        %703 = vrot.lane.b32.xlu0 %v702, 32
        %v704 = vpop.permute.xlu0 %703
        %vm706 = vcmask 1045504
        %v707 = vrot.slane %v695, 2
        %v708 = vrot.slane %v696, 2
        %v709 = vsel %vm706, %v707, %v708
        %710 = vrot.lane.b32.xlu0 %v709, 64
        %v711 = vpop.permute.xlu0 %710
        %vm713 = vcmask 1044480
        %v714 = vrot.slane %v695, 3
        %v715 = vrot.slane %v696, 3
        %v716 = vsel %vm713, %v714, %v715
        %717 = vrot.lane.b32.xlu0 %v716, 96
        %v718 = vpop.permute.xlu0 %717
        %v720 = vrot.slane %v695, 4
        %v721 = vrot.slane %v696, 4
        %v722 = vsel %vm694, %v720, %v721
        %vm724 = vcmask 1042432
        %v725 = vrot.slane %v695, 5
        %v726 = vrot.slane %v696, 5
        %v727 = vsel %vm724, %v725, %v726
        %728 = vrot.lane.b32.xlu0 %v727, 32
        %v729 = vpop.permute.xlu0 %728
        %vm731 = vcmask 1041408
        %v732 = vrot.slane %v695, 6
        %v733 = vrot.slane %v696, 6
        %v734 = vsel %vm731, %v732, %v733
        %735 = vrot.lane.b32.xlu0 %v734, 64
        %v736 = vpop.permute.xlu0 %735
        %vm738 = vcmask 1040384
        %v739 = vrot.slane %v695, 7
        %v740 = vrot.slane %v696, 7
        %v741 = vsel %vm738, %v739, %v740
        %742 = vrot.lane.b32.xlu0 %v741, 96
        %v743 = vpop.permute.xlu0 %742
        %v745 = vsel %vm301, %v695, %v704
        %vm746 = vcmask 523264
        %v747 = vsel %vm746, %v745, %v711
        %vm748 = vcmask 785408
        %v749 = vsel %vm748, %v747, %v718
        %v750 = vsel %vm301, %v722, %v729
        %v751 = vsel %vm746, %v750, %v736
        %v752 = vsel %vm748, %v751, %v743
        %v754 = vrot.slane %v653, 4
        %v756 = vsel %vm694, 0.0, %v754
        %v757 = vsel %vm694, %v754, 0.0
        %v760 = vrot.slane %v756, 1
        %v761 = vrot.slane %v757, 1
        %v762 = vsel %vm699, %v760, %v761
        %763 = vrot.lane.b32.xlu0 %v762, 32
        %v764 = vpop.permute.xlu0 %763
        %v766 = vrot.slane %v756, 2
        %v767 = vrot.slane %v757, 2
        %v768 = vsel %vm706, %v766, %v767
        %769 = vrot.lane.b32.xlu0 %v768, 64
        %v770 = vpop.permute.xlu0 %769
        %v772 = vrot.slane %v756, 3
        %v773 = vrot.slane %v757, 3
        %v774 = vsel %vm713, %v772, %v773
        %775 = vrot.lane.b32.xlu0 %v774, 96
        %v776 = vpop.permute.xlu0 %775
        %v778 = vrot.slane %v756, 4
        %v779 = vrot.slane %v757, 4
        %v780 = vsel %vm694, %v778, %v779
        %v782 = vrot.slane %v756, 5
        %v783 = vrot.slane %v757, 5
        %v784 = vsel %vm724, %v782, %v783
        %785 = vrot.lane.b32.xlu0 %v784, 32
        %v786 = vpop.permute.xlu0 %785
        %v788 = vrot.slane %v756, 6
        %v789 = vrot.slane %v757, 6
        %v790 = vsel %vm731, %v788, %v789
        %791 = vrot.lane.b32.xlu0 %v790, 64
        %v792 = vpop.permute.xlu0 %791
        %v794 = vrot.slane %v756, 7
        %v795 = vrot.slane %v757, 7
        %v796 = vsel %vm738, %v794, %v795
        %797 = vrot.lane.b32.xlu0 %v796, 96
        %v798 = vpop.permute.xlu0 %797
        %v800 = vsel %vm301, %v756, %v764
        %v801 = vsel %vm746, %v800, %v770
        %v802 = vsel %vm748, %v801, %v776
        %v803 = vsel %vm301, %v780, %v786
        %v804 = vsel %vm746, %v803, %v792
        %v805 = vsel %vm748, %v804, %v798
        %v806 = vperm.slane %v690, 0
        %v807 = vsel %vm301, %v696, 0
        %v809 = vsel %vm301, %v757, 0
        %811 = vmatpush.msra.mxu0 %v669
        %812 = vmatpush.msra.mxu0 %v668
        %813 = vmatpush.msra.mxu0 %v667
        %814 = vmatpush.msra.mxu0 %v666
        %815 = vmatpush.msra.mxu0 %v665
        %816 = vmatpush.msra.mxu0 %v664
        %817 = vmatpush.msra.mxu0 %v663
        %818 = vmatpush.msra.mxu0 %v662
        %819 = vmatpush.msra.mxu0 %v661
        %820 = vmatpush.msra.mxu0 %v660
        %821 = vmatpush.msra.mxu0 %v659
        %822 = vmatpush.msra.mxu0 %v658
        %823 = vmatpush.msra.mxu0 %v657
        %824 = vmatpush.msra.mxu0 %v656
        %825 = vmatpush.msra.mxu0 %v655
        %826 = vmatpush.msra.mxu0 %v654
        %827 = vmatmul.f32.gmra.mxu0 %v749
        %v828 = vpop.f32.mrf.mxu0
        %v829 = vadd.f32 %v806, %v828
        %830 = vmatmul.f32.gmra.mxu0 %v802
        %v831 = vpop.f32.mrf.mxu0
        %v832 = vadd.f32 %v806, %v831
        %833 = vdwg.mxu0
        %834 = vmatpush.msra.mxu0 %v685
        %835 = vmatpush.msra.mxu0 %v684
        %836 = vmatpush.msra.mxu0 %v683
        %837 = vmatpush.msra.mxu0 %v682
        %838 = vmatpush.msra.mxu0 %v681
        %839 = vmatpush.msra.mxu0 %v680
        %840 = vmatpush.msra.mxu0 %v679
        %841 = vmatpush.msra.mxu0 %v678
        %842 = vmatpush.msra.mxu0 %v677
        %843 = vmatpush.msra.mxu0 %v676
        %844 = vmatpush.msra.mxu0 %v675
        %845 = vmatpush.msra.mxu0 %v674
        %846 = vmatpush.msra.mxu0 %v673
        %847 = vmatpush.msra.mxu0 %v672
        %848 = vmatpush.msra.mxu0 %v671
        %849 = vmatpush.msra.mxu0 %v670
        %850 = vmatmul.f32.gmra.mxu0 %v752
        %v851 = vpop.f32.mrf.mxu0
        %v852 = vadd.f32 %v829, %v851
        %853 = vmatmul.f32.gmra.mxu0 %v805
        %v854 = vpop.f32.mrf.mxu0
        %v855 = vadd.f32 %v832, %v854
        %856 = vdwg.mxu0
        %857 = vmatpush.msra.mxu0 0.0
        %858 = vmatpush.msra.mxu0 0.0
        %859 = vmatpush.msra.mxu0 0.0
        %860 = vmatpush.msra.mxu0 0.0
        %861 = vmatpush.msra.mxu0 0.0
        %862 = vmatpush.msra.mxu0 0.0
        %863 = vmatpush.msra.mxu0 0.0
        %864 = vmatpush.msra.mxu0 0.0
        %865 = vmatpush.msra.mxu0 0.0
        %866 = vmatpush.msra.mxu0 0.0
        %867 = vmatpush.msra.mxu0 0.0
        %868 = vmatpush.msra.mxu0 0.0
        %869 = vmatpush.msra.mxu0 %v689
        %870 = vmatpush.msra.mxu0 %v688
        %871 = vmatpush.msra.mxu0 %v687
        %872 = vmatpush.msra.mxu0 %v686
        %873 = vmatmul.f32.gmra.mxu0 %v807
        %v874 = vpop.f32.mrf.mxu0
        %v875 = vadd.f32 %v852, %v874
        %876 = vmatmul.f32.gmra.mxu0 %v809
        %v877 = vpop.f32.mrf.mxu0
        %v878 = vadd.f32 %v855, %v877
        %879 = vdwg.mxu0
        %v880 = vmax.f32 %v875, 0.0
        %v881 = vmax.f32 %v878, 0.0
        %v882 = vperm.slane %v343, 3
        %v884 = vsel %vm746, %v880, 0
        %v887 = vsel %vm746, %v881, 0
        %889 = vmatpush.msra.mxu0 0.0
        %890 = vmatpush.msra.mxu0 0.0
        %891 = vmatpush.msra.mxu0 0.0
        %892 = vmatpush.msra.mxu0 0.0
        %893 = vmatpush.msra.mxu0 0.0
        %894 = vmatpush.msra.mxu0 0.0
        %895 = vmatpush.msra.mxu0 0.0
        %896 = vmatpush.msra.mxu0 0.0
        %897 = vmatpush.msra.mxu0 %v338
        %898 = vmatpush.msra.mxu0 %v337
        %899 = vmatpush.msra.mxu0 %v336
        %900 = vmatpush.msra.mxu0 %v335
        %901 = vmatpush.msra.mxu0 %v334
        %902 = vmatpush.msra.mxu0 %v333
        %903 = vmatpush.msra.mxu0 %v332
        %904 = vmatpush.msra.mxu0 %v331
        %905 = vmatmul.f32.gmra.mxu0 %v884
        %v906 = vpop.f32.mrf.mxu0
        %v907 = vadd.f32 %v882, %v906
        %908 = vmatmul.f32.gmra.mxu0 %v887
        %v909 = vpop.f32.mrf.mxu0
        %v910 = vadd.f32 %v882, %v909
        %911 = vdwg.mxu0
        %v912 = vadd.f32 %v907, %v652
        %v913 = vadd.f32 %v910, %v653
        %v914 = vsel %vm301, %v912, 0.0
        %915 = vadd.xlane.f32.xlu0 %v914
        %v916 = vpop.xlane.xlu0 %915
        %v917 = vsel %vm301, %v913, 0.0
        %918 = vadd.xlane.f32.xlu0 %v917
        %v919 = vpop.xlane.xlu0 %918
        %v920 = vmul.f32 %v916, %v597
        %v921 = vmul.f32 %v919, %v597
        %v922 = vsub.f32 %v912, %v920
        %v923 = vsub.f32 %v913, %v921
        %v924 = vmul.f32 %v922, %v922
        %v925 = vmul.f32 %v923, %v923
        %v926 = vsel %vm301, %v924, 0.0
        %927 = vadd.xlane.f32.xlu0 %v926
        %v928 = vpop.xlane.xlu0 %927
        %v929 = vsel %vm301, %v925, 0.0
        %930 = vadd.xlane.f32.xlu0 %v929
        %v931 = vpop.xlane.xlu0 %930
        %v932 = vmul.f32 %v928, %v597
        %v933 = vmul.f32 %v931, %v597
        %v934 = vadd.f32 %v932, 1e-05
        %v935 = vadd.f32 %v933, 1e-05
        %v936 = vrsqrt.pop %v934
        %v937 = vmul.f32 %v936, %v934
        %v938 = vmul.f32 %v937, %v936
        %v939 = vmul.f32 0.5, %v938
        %v940 = vsub.f32 1.5, %v939
        %v941 = vmul.f32 %v936, %v940
        %vm942 = vweird.f32 %v934
        %vm943 = vweird.f32 %v936
        %vm944 = vmor %vm942, %vm943
        %v945 = vsel %vm944, %v936, %v941
        %v946 = vrsqrt.pop %v935
        %v947 = vmul.f32 %v946, %v935
        %v948 = vmul.f32 %v947, %v946
        %v949 = vmul.f32 0.5, %v948
        %v950 = vsub.f32 1.5, %v949
        %v951 = vmul.f32 %v946, %v950
        %vm952 = vweird.f32 %v935
        %vm953 = vweird.f32 %v946
        %vm954 = vmor %vm952, %vm953
        %v955 = vsel %vm954, %v946, %v951
        %v956 = vmul.f32 %v922, %v945
        %v957 = vmul.f32 %v923, %v955
        %v958 = vperm.slane %v343, 4
        %v959 = vmul.f32 %v956, %v958
        %v960 = vmul.f32 %v957, %v958
        %v961 = vperm.slane %v343, 5
        %v962 = vadd.f32 %v959, %v961
        %v963 = vadd.f32 %v960, %v961
        %v964 = vmul.f32 %v962, %v645
        %v965 = vmul.f32 %v963, %v650
        %966 = vst.msk [vmem:[#allocation2] sm:$0xff] %vm301, %v964
        %967 = vst.msk [vmem:[#allocation2 + $0x8] sm:$0xff] %vm301, %v965
        %968 = vst.msk [vmem:[#allocation3] sm:$0xff] %vm301, %v964
        %969 = vst.msk [vmem:[#allocation3 + $0x8] sm:$0xff] %vm301, %v965
        // Predicated region
        $region49: #{tpu_custom_call.1} parent=43 // pred_check
          %p970 = pneg %p172
        $region50: #{tpu_custom_call.1} parent=43 // pred_check_branch
          %972 = sbr.rel (%p970) target = $region52
        $region51: #{tpu_custom_call.1} parent=43 // pred_region
          %974 = vsyncadd [#allocation4], 0
          %s975 = sshll.u32 [#allocation3], 4
          %s976 = int_to_ptr.vmem [resolvable:$true] %s975
          %s977 = sshll.u32 %s6, 4
          %s978 = int_to_ptr.hbm [resolvable:$true] %s977
          %983 = dma.vmem_to_hbm [thread:$0]  %s976, 256, %s978, [#allocation4], 128, 128, 8
        $region52: #{tpu_custom_call.1} parent=43 // pred_fallthru
          _
        // Predicated region
        $region53: #{tpu_custom_call.1} parent=43 // pred_check
          %p984 = pneg %p172
        $region54: #{tpu_custom_call.1} parent=43 // pred_check_branch
          %986 = sbr.rel (%p984) target = $region56
        $region55: #{tpu_custom_call.1} parent=43 // pred_region
          %988 = dma.done [#allocation4], 256
        $region56: #{tpu_custom_call.1} parent=43 // pred_fallthru
          _
      $region44: #{tpu_custom_call.1} parent=5 // pred_fallthru
        _
      %p989 = scmp.le.s32.totalorder 2, %s13
      // Predicated region
      $region57: #{tpu_custom_call.1} parent=5 // pred_check
        %p990 = pneg %p989
      $region58: #{tpu_custom_call.1} parent=5 // pred_check_branch
        %992 = sbr.rel (%p990) target = $region60
      $region59: #{tpu_custom_call.1} parent=5 // pred_region
        %s993 = ssub.s32 %s13, 2
      $region60: #{tpu_custom_call.1} parent=5 // pred_fallthru
        _
    $region6: #{tpu_custom_call.1} parent=1 // loop_footer
      %s17 = sadd.s32 1, %s13
    $region7: #{tpu_custom_call.1} parent=1 // loop_footer_branch
      %12 = sbr.rel target = $region3
    $region8: #{tpu_custom_call.1} parent=1 // loop_exit
      _
    %994 = vsyncpa [#allocation4], 1
    %s995 = scalar_lea.sflag [#allocation4], 1
    %996 = vsyncpa %s995, 1

</llo_original>
